<compile_context>
chip_gen: v7x
topology: tpu7x:2x2x1
jax: 0.10.0
libtpu: 0.0.40
codegen_flags: <defaults>
</compile_context>

<pallas_src>
import jax
import jax.numpy as jnp
from jax.experimental import pallas as pl
from jax.experimental.pallas import tpu as pltpu


def _upconv_kernel(p_ref, w_ref, gamma_ref, beta_ref, o_ref):
    """Fused im2col-conv + BatchNorm2d(training stats) + LeakyReLU(0.2).

    p_ref    : (9*Cin, N*H*W) bf16  im2col patches (row = tap*Cin + cin,
                                    col = n*H*W + h*W + w)
    w_ref    : (Cout, 9*Cin)  bf16  conv weight, columns match patch rows
    gamma_ref: (Cout, 1)      f32   BN affine weight
    beta_ref : (Cout, 1)      f32   BN affine bias
    o_ref    : (N, Cout, H*W) f32   normalized + activated conv output
    """
    N, _, HW = o_ref.shape
    eps = 1e-5
    inv_count = 1.0 / float(N * HW)

    # ---- conv: one MXU matmul for the whole batch (M=Cout, K=9*Cin, N=N*HW)
    acc = jax.lax.dot_general(
        w_ref[...], p_ref[...],
        dimension_numbers=(((1,), (0,)), ((), ())),
        preferred_element_type=jnp.float32)               # (Cout, N*HW) f32

    # ---- BN batch statistics: one sum / sum-of-squares lane reduction ----
    s = jnp.sum(acc, axis=1, keepdims=True)               # (Cout, 1)
    ss = jnp.sum(acc * acc, axis=1, keepdims=True)        # (Cout, 1)
    mean = s * inv_count
    var = ss * inv_count - mean * mean                    # E[x^2] - E[x]^2
    scale = gamma_ref[...] * jax.lax.rsqrt(var + eps)     # (Cout, 1)
    bias = beta_ref[...] - mean * scale                   # (Cout, 1)

    # ---- normalize as one FMA + LeakyReLU(0.2); lane-dense stores ----
    y = acc * scale + bias                                # (Cout, N*HW)
    y = jnp.where(y >= 0, y, 0.2 * y)
    for n in range(N):  # tiny static batch; static lane slice (multiple of 128)
        o_ref[n] = y[:, n * HW:(n + 1) * HW]


def upconv_block(x_nchw, w_oihw, gamma, beta):
    """Forward pass of UpConvBlock.

    x_nchw: (N, Cin, Hin, Win) f32
    w_oihw: (Cout, Cin, 3, 3)  f32  (PyTorch Conv2d weight layout)
    gamma, beta: (Cout,) f32        (BatchNorm2d affine params)
    Returns (N, Cout, 2*Hin, 2*Win) f32.
    """
    N, Cin, Hin, Win = x_nchw.shape
    Cout = w_oihw.shape[0]
    H, W = 2 * Hin, 2 * Win
    HW = H * W

    # --- glue (plain JAX, fused by XLA): nearest x2 upsample, reflect pad,
    #     im2col.  bf16 cast happens first (nearest/pad/slice are exact), so
    #     the glue moves half the bytes.  Everything stays channel-major so no
    #     output-side transpose is ever needed.
    # TODO(synk): for production sizes, fold the upsample/pad/im2col gather
    #             into the kernel (it is a 9x HBM expansion here) and tile the
    #             grid over N / spatial rows with a two-pass BN reduction.
    x_bf16 = x_nchw.astype(jnp.bfloat16)
    x_up = jnp.repeat(jnp.repeat(x_bf16, 2, axis=2), 2, axis=3)       # (N,Cin,H,W)
    x_pad = jnp.pad(x_up, ((0, 0), (0, 0), (1, 1), (1, 1)), mode="reflect")
    x_pad = jnp.transpose(x_pad, (1, 0, 2, 3))                        # (Cin,N,H+2,W+2)
    taps = [x_pad[:, :, dy:dy + H, dx:dx + W]
            for dy in range(3) for dx in range(3)]                    # 9x(Cin,N,H,W)
    patches = jnp.stack(taps, axis=0).reshape(9 * Cin, N * HW)        # (9Cin, N*HW)

    # (Cout, Cin, 3, 3) -> (Cout, 9*Cin); column index = (dy*3+dx)*Cin + cin
    w_mat = jnp.transpose(w_oihw, (0, 2, 3, 1)).reshape(Cout, 9 * Cin)
    w_mat = w_mat.astype(jnp.bfloat16)
    gamma2 = gamma.reshape(Cout, 1).astype(jnp.float32)
    beta2 = beta.reshape(Cout, 1).astype(jnp.float32)

    out = pl.pallas_call(
        _upconv_kernel,
        out_shape=jax.ShapeDtypeStruct((N, Cout, HW), jnp.float32),
        grid=(1,),
        in_specs=[
            pl.BlockSpec((9 * Cin, N * HW), lambda i: (0, 0)),
            pl.BlockSpec((Cout, 9 * Cin), lambda i: (0, 0)),
            pl.BlockSpec((Cout, 1), lambda i: (0, 0)),
            pl.BlockSpec((Cout, 1), lambda i: (0, 0)),
        ],
        out_specs=pl.BlockSpec((N, Cout, HW), lambda i: (0, 0, 0)),
        compiler_params=pltpu.CompilerParams(
            dimension_semantics=("arbitrary",)),
    )(patches, w_mat, gamma2, beta2)

    return out.reshape(N, Cout, H, W)  # NCHW directly, no transpose needed


def _reference(x_nchw, w_oihw, gamma, beta):
    """Pure-JAX reference mirroring the PyTorch forward (training-mode BN).

    The conv inputs are cast to bf16 (f32 accumulation) to match the kernel's
    MXU input precision; BN / LeakyReLU are f32.
    """
    x_up = jnp.repeat(jnp.repeat(x_nchw, 2, axis=2), 2, axis=3)
    x_pad = jnp.pad(x_up, ((0, 0), (0, 0), (1, 1), (1, 1)), mode="reflect")
    conv = jax.lax.conv_general_dilated(
        x_pad.astype(jnp.bfloat16), w_oihw.astype(jnp.bfloat16),
        window_strides=(1, 1), padding="VALID",
        dimension_numbers=("NCHW", "OIHW", "NCHW"),
        preferred_element_type=jnp.float32)
    mean = jnp.mean(conv, axis=(0, 2, 3), keepdims=True)
    var = jnp.mean((conv - mean) ** 2, axis=(0, 2, 3), keepdims=True)
    y = (conv - mean) * jax.lax.rsqrt(var + 1e-5)
    y = y * gamma.reshape(1, -1, 1, 1) + beta.reshape(1, -1, 1, 1)
    return jnp.where(y >= 0, y, 0.2 * y)


if __name__ == "__main__":
    key = jax.random.PRNGKey(0)
    k_x, k_w, k_g, k_b = jax.random.split(key, 4)

    N, IN_CH, OUT_CH, HIN, WIN = 2, 4, 8, 16, 16

    x = jax.random.normal(k_x, (N, IN_CH, HIN, WIN), dtype=jnp.float32)
    # Conv2d(in_ch=4, out_ch=8, kernel=3, bias=False) weight: (8, 4, 3, 3)
    w = jax.random.normal(k_w, (OUT_CH, IN_CH, 3, 3), dtype=jnp.float32) * 0.1
    # BatchNorm2d affine params (deterministic, non-trivial values)
    gamma = 1.0 + 0.1 * jax.random.normal(k_g, (OUT_CH,), dtype=jnp.float32)
    beta = 0.1 * jax.random.normal(k_b, (OUT_CH,), dtype=jnp.float32)

    upconv = jax.jit(upconv_block)
    out = jax.block_until_ready(upconv(x, w, gamma, beta))

    ref = jax.block_until_ready(_reference(x, w, gamma, beta))
    assert out.shape == (N, OUT_CH, 2 * HIN, 2 * WIN)
    max_err = float(jnp.max(jnp.abs(out - ref)))
    assert jnp.allclose(out, ref, atol=2e-3, rtol=2e-3), max_err

    print("KERNEL_OK")
</pallas_src>

<mosaic_0001>
module attributes {stable_mosaic.version = 11 : i64} {
  func.func @_upconv_kernel(%arg0: i32, %arg1: memref<36x2048xbf16, #tpu.memory_space<vmem>>, %arg2: memref<8x36xbf16, #tpu.memory_space<vmem>>, %arg3: memref<8x1xf32, #tpu.memory_space<vmem>>, %arg4: memref<8x1xf32, #tpu.memory_space<vmem>>, %arg5: memref<2x8x1024xf32, #tpu.memory_space<vmem>>) attributes {dimension_semantics = [#tpu.dimension_semantics<arbitrary>], iteration_bounds = array<i64: 1>, scalar_prefetch = 0 : i64, scratch_operands = 0 : i64, tpu.core_type = #tpu.core_type<tc>, window_params = [{pipeline_mode = #tpu.pipeline_mode<synchronous>, transform_indices = @transform_0, window_bounds = array<i64: 36, 2048>}, {pipeline_mode = #tpu.pipeline_mode<synchronous>, transform_indices = @transform_1, window_bounds = array<i64: 8, 36>}, {pipeline_mode = #tpu.pipeline_mode<synchronous>, transform_indices = @transform_2, window_bounds = array<i64: 8, 1>}, {pipeline_mode = #tpu.pipeline_mode<synchronous>, transform_indices = @transform_3, window_bounds = array<i64: 8, 1>}, {pipeline_mode = #tpu.pipeline_mode<synchronous>, transform_indices = @transform_4, window_bounds = array<i64: 2, 8, 1024>}]} {
    %c0 = arith.constant 0 : index
    %c0_0 = arith.constant 0 : index
    %0 = vector.load %arg2[%c0, %c0_0] : memref<8x36xbf16, #tpu.memory_space<vmem>>, vector<8x36xbf16>
    %c0_1 = arith.constant 0 : index
    %c0_2 = arith.constant 0 : index
    %1 = vector.load %arg1[%c0_1, %c0_2] : memref<36x2048xbf16, #tpu.memory_space<vmem>>, vector<36x2048xbf16>
    %cst = arith.constant dense<0.000000e+00> : vector<8x2048xf32>
    %2 = tpu.matmul %0, %1, %cst {dimension_numbers = #tpu.dot_dimension_numbers<[1], [0], [0], [1], [0, 0, 1, 1], [], []>} : vector<8x36xbf16>, vector<36x2048xbf16>, vector<8x2048xf32> -> vector<8x2048xf32>
    %cst_3 = arith.constant dense<0.000000e+00> : vector<8xf32>
    %3 = vector.multi_reduction <add>, %2, %cst_3 [1] : vector<8x2048xf32> to vector<8xf32>
    %4 = vector.shape_cast %3 : vector<8xf32> to vector<8x1xf32>
    %5 = arith.mulf %2, %2 : vector<8x2048xf32>
    %cst_4 = arith.constant dense<0.000000e+00> : vector<8xf32>
    %6 = vector.multi_reduction <add>, %5, %cst_4 [1] : vector<8x2048xf32> to vector<8xf32>
    %7 = vector.shape_cast %6 : vector<8xf32> to vector<8x1xf32>
    %cst_5 = arith.constant 4.8828125E-4 : f32
    %8 = vector.broadcast %cst_5 : f32 to vector<8x1xf32>
    %9 = arith.mulf %4, %8 : vector<8x1xf32>
    %cst_6 = arith.constant 4.8828125E-4 : f32
    %10 = vector.broadcast %cst_6 : f32 to vector<8x1xf32>
    %11 = arith.mulf %7, %10 : vector<8x1xf32>
    %12 = arith.mulf %9, %9 : vector<8x1xf32>
    %13 = arith.subf %11, %12 : vector<8x1xf32>
    %c0_7 = arith.constant 0 : index
    %c0_8 = arith.constant 0 : index
    %14 = vector.load %arg3[%c0_7, %c0_8] : memref<8x1xf32, #tpu.memory_space<vmem>>, vector<8x1xf32>
    %cst_9 = arith.constant 9.99999974E-6 : f32
    %15 = vector.broadcast %cst_9 : f32 to vector<8x1xf32>
    %16 = arith.addf %13, %15 : vector<8x1xf32>
    %17 = math.rsqrt %16 : vector<8x1xf32>
    %18 = arith.mulf %14, %17 : vector<8x1xf32>
    %c0_10 = arith.constant 0 : index
    %c0_11 = arith.constant 0 : index
    %19 = vector.load %arg4[%c0_10, %c0_11] : memref<8x1xf32, #tpu.memory_space<vmem>>, vector<8x1xf32>
    %20 = arith.mulf %9, %18 : vector<8x1xf32>
    %21 = arith.subf %19, %20 : vector<8x1xf32>
    %22 = vector.broadcast %18 : vector<8x1xf32> to vector<8x2048xf32>
    %23 = arith.mulf %2, %22 : vector<8x2048xf32>
    %24 = vector.broadcast %21 : vector<8x1xf32> to vector<8x2048xf32>
    %25 = arith.addf %23, %24 : vector<8x2048xf32>
    %cst_12 = arith.constant 0.000000e+00 : f32
    %26 = vector.broadcast %cst_12 : f32 to vector<8x2048xf32>
    %27 = arith.cmpf oge, %25, %26 : vector<8x2048xf32>
    %cst_13 = arith.constant 2.000000e-01 : f32
    %28 = vector.broadcast %cst_13 : f32 to vector<8x2048xf32>
    %29 = arith.mulf %28, %25 : vector<8x2048xf32>
    %30 = arith.select %27, %25, %29 : vector<8x2048xi1>, vector<8x2048xf32>
    %31 = vector.extract_strided_slice %30 {offsets = [0, 0], sizes = [8, 1024], strides = [1, 1]} : vector<8x2048xf32> to vector<8x1024xf32>
    %c0_14 = arith.constant 0 : index
    %c0_15 = arith.constant 0 : index
    %c0_16 = arith.constant 0 : index
    %32 = vector.load %arg5[%c0_14, %c0_15, %c0_16] : memref<2x8x1024xf32, #tpu.memory_space<vmem>>, vector<1x8x1024xf32>
    %33 = vector.shape_cast %32 : vector<1x8x1024xf32> to vector<8x1024xf32>
    %34 = vector.shape_cast %31 : vector<8x1024xf32> to vector<1x8x1024xf32>
    tpu.vector_store %arg5[%c0_14, %c0_15, %c0_16], %34 {strides = array<i32>} : memref<2x8x1024xf32, #tpu.memory_space<vmem>>, vector<1x8x1024xf32>,
    %35 = vector.extract_strided_slice %30 {offsets = [0, 1024], sizes = [8, 1024], strides = [1, 1]} : vector<8x2048xf32> to vector<8x1024xf32>
    %c1 = arith.constant 1 : index
    %c0_17 = arith.constant 0 : index
    %c0_18 = arith.constant 0 : index
    %36 = vector.load %arg5[%c1, %c0_17, %c0_18] : memref<2x8x1024xf32, #tpu.memory_space<vmem>>, vector<1x8x1024xf32>
    %37 = vector.shape_cast %36 : vector<1x8x1024xf32> to vector<8x1024xf32>
    %38 = vector.shape_cast %35 : vector<8x1024xf32> to vector<1x8x1024xf32>
    tpu.vector_store %arg5[%c1, %c0_17, %c0_18], %38 {strides = array<i32>} : memref<2x8x1024xf32, #tpu.memory_space<vmem>>, vector<1x8x1024xf32>,
    return
  }
  func.func @transform_0(%arg0: i32) -> (i32, i32) {
    %c0_i32 = arith.constant 0 : i32
    %c0_i32_0 = arith.constant 0 : i32
    %c0_i32_1 = arith.constant 0 : i32
    return %c0_i32, %c0_i32_0 : i32, i32
  }
  func.func @transform_1(%arg0: i32) -> (i32, i32) {
    %c0_i32 = arith.constant 0 : i32
    %c0_i32_0 = arith.constant 0 : i32
    %c0_i32_1 = arith.constant 0 : i32
    return %c0_i32, %c0_i32_0 : i32, i32
  }
  func.func @transform_2(%arg0: i32) -> (i32, i32) {
    %c0_i32 = arith.constant 0 : i32
    %c0_i32_0 = arith.constant 0 : i32
    %c0_i32_1 = arith.constant 0 : i32
    return %c0_i32, %c0_i32_0 : i32, i32
  }
  func.func @transform_3(%arg0: i32) -> (i32, i32) {
    %c0_i32 = arith.constant 0 : i32
    %c0_i32_0 = arith.constant 0 : i32
    %c0_i32_1 = arith.constant 0 : i32
    return %c0_i32, %c0_i32_0 : i32, i32
  }
  func.func @transform_4(%arg0: i32) -> (i32, i32, i32) {
    %c0_i32 = arith.constant 0 : i32
    %c0_i32_0 = arith.constant 0 : i32
    %c0_i32_1 = arith.constant 0 : i32
    %c0_i32_2 = arith.constant 0 : i32
    return %c0_i32, %c0_i32_0, %c0_i32_1 : i32, i32, i32
  }
}

</mosaic_0001>

<llo_original>
// kernel: upconv_block.1
$region0: #{upconv_block.1}
  #allocation0 [shape = 'u32[]', space=smem, size = 0x4, offset = 0x4, fixed_abs, tag = 'smem constant byte address 0x4 - core index']
  #allocation1 [shape = 'u32[144,128]{1,0:T(1,128)}', space=vmem, size = 0x12000, scoped, tag = 'internal scratch']
  %s0 = inlined_call_operand.vmem [shape: bf16[36,2048], index: 0, kind: input, shape index: {}]
  %s1 = inlined_call_operand.vmem [shape: bf16[8,36], index: 1, kind: input, shape index: {}]
  %s2 = inlined_call_operand.vmem [shape: f32[8,1], index: 2, kind: input, shape index: {}]
  %s3 = inlined_call_operand.vmem [shape: f32[8,1], index: 3, kind: input, shape index: {}]
  %s4 = inlined_call_operand.vmem [shape: f32[2,8,1024], index: 4, kind: output, shape index: {}]
  %s5 = sld [smem:[#allocation0]]
  $region26: #{upconv_block.1} parent=0
    _
  %s7 = ssub.s32 1, %s5
  %s8 = scalar_select 0, %s7, %s5
  // Predicated region
  $region2: #{upconv_block.1} parent=0 // pred_check
    _
  $region3: #{upconv_block.1} parent=0 // pred_check_branch
    %10 = sbr.rel (0) target = $region5
  $region4: #{upconv_block.1} parent=0 // pred_region
    _
  $region5: #{upconv_block.1} parent=0 // pred_fallthru
    _
  // Predicated region
  $region6: #{upconv_block.1} parent=0 // pred_check
    _
  $region7: #{upconv_block.1} parent=0 // pred_check_branch
    %12 = sbr.rel (0) target = $region9
  $region8: #{upconv_block.1} parent=0 // pred_region
    _
  $region9: #{upconv_block.1} parent=0 // pred_fallthru
    _
  // Predicated region
  $region10: #{upconv_block.1} parent=0 // pred_check
    _
  $region11: #{upconv_block.1} parent=0 // pred_check_branch
    %14 = sbr.rel (0) target = $region13
  $region12: #{upconv_block.1} parent=0 // pred_region
    _
  $region13: #{upconv_block.1} parent=0 // pred_fallthru
    _
  // Predicated region
  $region14: #{upconv_block.1} parent=0 // pred_check
    _
  $region15: #{upconv_block.1} parent=0 // pred_check_branch
    %16 = sbr.rel (0) target = $region17
  $region16: #{upconv_block.1} parent=0 // pred_region
    _
  $region17: #{upconv_block.1} parent=0 // pred_fallthru
    _
  %v18 = vld [vmem:[%s1] sm:$0xf]
  %v19 = vld [vmem:[%s0] sm:$0xff]
  %v20 = vld [vmem:[%s0 + $0x8] sm:$0xff]
  %v21 = vld [vmem:[%s0 + $0x10] sm:$0xff]
  %v22 = vld [vmem:[%s0 + $0x18] sm:$0xff]
  %v23 = vld [vmem:[%s0 + $0x20] sm:$0xff]
  %v24 = vld [vmem:[%s0 + $0x28] sm:$0xff]
  %v25 = vld [vmem:[%s0 + $0x30] sm:$0xff]
  %v26 = vld [vmem:[%s0 + $0x38] sm:$0xff]
  %v27 = vld [vmem:[%s0 + $0x40] sm:$0xff]
  %v28 = vld [vmem:[%s0 + $0x48] sm:$0xff]
  %v29 = vld [vmem:[%s0 + $0x50] sm:$0xff]
  %v30 = vld [vmem:[%s0 + $0x58] sm:$0xff]
  %v31 = vld [vmem:[%s0 + $0x60] sm:$0xff]
  %v32 = vld [vmem:[%s0 + $0x68] sm:$0xff]
  %v33 = vld [vmem:[%s0 + $0x70] sm:$0xff]
  %v34 = vld [vmem:[%s0 + $0x78] sm:$0xff]
  %v35 = vld [vmem:[%s0 + $0x80] sm:$0xff]
  %v36 = vld [vmem:[%s0 + $0x88] sm:$0xff]
  %v37 = vld [vmem:[%s0 + $0x90] sm:$0xff]
  %v38 = vld [vmem:[%s0 + $0x98] sm:$0xff]
  %v39 = vld [vmem:[%s0 + $0xa0] sm:$0xff]
  %v40 = vld [vmem:[%s0 + $0xa8] sm:$0xff]
  %v41 = vld [vmem:[%s0 + $0xb0] sm:$0xff]
  %v42 = vld [vmem:[%s0 + $0xb8] sm:$0xff]
  %v43 = vld [vmem:[%s0 + $0xc0] sm:$0xff]
  %v44 = vld [vmem:[%s0 + $0xc8] sm:$0xff]
  %v45 = vld [vmem:[%s0 + $0xd0] sm:$0xff]
  %v46 = vld [vmem:[%s0 + $0xd8] sm:$0xff]
  %v47 = vld [vmem:[%s0 + $0xe0] sm:$0xff]
  %v48 = vld [vmem:[%s0 + $0xe8] sm:$0xff]
  %v49 = vld [vmem:[%s0 + $0xf0] sm:$0xff]
  %v50 = vld [vmem:[%s0 + $0xf8] sm:$0xff]
  %v51 = vld [vmem:[%s0 + $0x100] sm:$0x33]
  %v52 = vld [vmem:[%s0 + $0x108] sm:$0x33]
  %v53 = vld [vmem:[%s0 + $0x110] sm:$0x33]
  %v54 = vld [vmem:[%s0 + $0x118] sm:$0x33]
  %v55 = vld [vmem:[%s0 + $0x120] sm:$0x33]
  %v56 = vld [vmem:[%s0 + $0x128] sm:$0x33]
  %v57 = vld [vmem:[%s0 + $0x130] sm:$0x33]
  %v58 = vld [vmem:[%s0 + $0x138] sm:$0x33]
  %v99 = vunpack.c.l.b16 %v19
  %v100 = vunpack.c.h.b16 %v19
  %v101 = vunpack.c.l.b16 %v20
  %v102 = vunpack.c.h.b16 %v20
  %v103 = vunpack.c.l.b16 %v21
  %v104 = vunpack.c.h.b16 %v21
  %v105 = vunpack.c.l.b16 %v22
  %v106 = vunpack.c.h.b16 %v22
  %v107 = vunpack.c.l.b16 %v23
  %v108 = vunpack.c.h.b16 %v23
  %v109 = vunpack.c.l.b16 %v24
  %v110 = vunpack.c.h.b16 %v24
  %v111 = vunpack.c.l.b16 %v25
  %v112 = vunpack.c.h.b16 %v25
  %v113 = vunpack.c.l.b16 %v26
  %v114 = vunpack.c.h.b16 %v26
  %v115 = vunpack.c.l.b16 %v27
  %v116 = vunpack.c.h.b16 %v27
  %v117 = vunpack.c.l.b16 %v28
  %v118 = vunpack.c.h.b16 %v28
  %v119 = vunpack.c.l.b16 %v29
  %v120 = vunpack.c.h.b16 %v29
  %v121 = vunpack.c.l.b16 %v30
  %v122 = vunpack.c.h.b16 %v30
  %v123 = vunpack.c.l.b16 %v31
  %v124 = vunpack.c.h.b16 %v31
  %v125 = vunpack.c.l.b16 %v32
  %v126 = vunpack.c.h.b16 %v32
  %v127 = vunpack.c.l.b16 %v33
  %v128 = vunpack.c.h.b16 %v33
  %v129 = vunpack.c.l.b16 %v34
  %v130 = vunpack.c.h.b16 %v34
  %v131 = vunpack.c.l.b16 %v35
  %v132 = vunpack.c.h.b16 %v35
  %v133 = vunpack.c.l.b16 %v36
  %v134 = vunpack.c.h.b16 %v36
  %v135 = vunpack.c.l.b16 %v37
  %v136 = vunpack.c.h.b16 %v37
  %v137 = vunpack.c.l.b16 %v38
  %v138 = vunpack.c.h.b16 %v38
  %v139 = vunpack.c.l.b16 %v39
  %v140 = vunpack.c.h.b16 %v39
  %v141 = vunpack.c.l.b16 %v40
  %v142 = vunpack.c.h.b16 %v40
  %v143 = vunpack.c.l.b16 %v41
  %v144 = vunpack.c.h.b16 %v41
  %v145 = vunpack.c.l.b16 %v42
  %v146 = vunpack.c.h.b16 %v42
  %v147 = vunpack.c.l.b16 %v43
  %v148 = vunpack.c.h.b16 %v43
  %v149 = vunpack.c.l.b16 %v44
  %v150 = vunpack.c.h.b16 %v44
  %v151 = vunpack.c.l.b16 %v45
  %v152 = vunpack.c.h.b16 %v45
  %v153 = vunpack.c.l.b16 %v46
  %v154 = vunpack.c.h.b16 %v46
  %v155 = vunpack.c.l.b16 %v47
  %v156 = vunpack.c.h.b16 %v47
  %v157 = vunpack.c.l.b16 %v48
  %v158 = vunpack.c.h.b16 %v48
  %v159 = vunpack.c.l.b16 %v49
  %v160 = vunpack.c.h.b16 %v49
  %v161 = vunpack.c.l.b16 %v50
  %v162 = vunpack.c.h.b16 %v50
  %v163 = vunpack.c.l.b16 %v51
  %v164 = vunpack.c.h.b16 %v51
  %v165 = vunpack.c.l.b16 %v52
  %v166 = vunpack.c.h.b16 %v52
  %v167 = vunpack.c.l.b16 %v53
  %v168 = vunpack.c.h.b16 %v53
  %v169 = vunpack.c.l.b16 %v54
  %v170 = vunpack.c.h.b16 %v54
  %v171 = vunpack.c.l.b16 %v55
  %v172 = vunpack.c.h.b16 %v55
  %v173 = vunpack.c.l.b16 %v56
  %v174 = vunpack.c.h.b16 %v56
  %v175 = vunpack.c.l.b16 %v57
  %v176 = vunpack.c.h.b16 %v57
  %v177 = vunpack.c.l.b16 %v58
  %v178 = vunpack.c.h.b16 %v58
  %v179 = vpack.c.b16 %v115, %v99
  %v180 = vpack.c.b16 %v116, %v100
  %v181 = vpack.c.b16 %v117, %v101
  %v182 = vpack.c.b16 %v118, %v102
  %v183 = vpack.c.b16 %v119, %v103
  %v184 = vpack.c.b16 %v120, %v104
  %v185 = vpack.c.b16 %v121, %v105
  %v186 = vpack.c.b16 %v122, %v106
  %v187 = vpack.c.b16 %v123, %v107
  %v188 = vpack.c.b16 %v124, %v108
  %v189 = vpack.c.b16 %v125, %v109
  %v190 = vpack.c.b16 %v126, %v110
  %v191 = vpack.c.b16 %v127, %v111
  %v192 = vpack.c.b16 %v128, %v112
  %v193 = vpack.c.b16 %v129, %v113
  %v194 = vpack.c.b16 %v130, %v114
  %v195 = vpack.c.b16 %v147, %v131
  %v196 = vpack.c.b16 %v148, %v132
  %v197 = vpack.c.b16 %v149, %v133
  %v198 = vpack.c.b16 %v150, %v134
  %v199 = vpack.c.b16 %v151, %v135
  %v200 = vpack.c.b16 %v152, %v136
  %v201 = vpack.c.b16 %v153, %v137
  %v202 = vpack.c.b16 %v154, %v138
  %v203 = vpack.c.b16 %v155, %v139
  %v204 = vpack.c.b16 %v156, %v140
  %v205 = vpack.c.b16 %v157, %v141
  %v206 = vpack.c.b16 %v158, %v142
  %v207 = vpack.c.b16 %v159, %v143
  %v208 = vpack.c.b16 %v160, %v144
  %v209 = vpack.c.b16 %v161, %v145
  %v210 = vpack.c.b16 %v162, %v146
  %v211 = vpack.c.b16 %v163, %v163
  %v212 = vpack.c.b16 %v164, %v164
  %v213 = vpack.c.b16 %v165, %v165
  %v214 = vpack.c.b16 %v166, %v166
  %v215 = vpack.c.b16 %v167, %v167
  %v216 = vpack.c.b16 %v168, %v168
  %v217 = vpack.c.b16 %v169, %v169
  %v218 = vpack.c.b16 %v170, %v170
  %v219 = vpack.c.b16 %v171, %v171
  %v220 = vpack.c.b16 %v172, %v172
  %v221 = vpack.c.b16 %v173, %v173
  %v222 = vpack.c.b16 %v174, %v174
  %v223 = vpack.c.b16 %v175, %v175
  %v224 = vpack.c.b16 %v176, %v176
  %v225 = vpack.c.b16 %v177, %v177
  %v226 = vpack.c.b16 %v178, %v178
  %vm259 = vcmask 293888
  %v261 = vsel %vm259, %v18, 0
  %vm263 = vcmask 1041408
  %v265 = vsel %vm263, %v211, 0
  %v268 = vsel %vm263, %v212, 0
  %v271 = vsel %vm263, %v213, 0
  %v274 = vsel %vm263, %v214, 0
  %v277 = vsel %vm263, %v215, 0
  %v280 = vsel %vm263, %v216, 0
  %v283 = vsel %vm263, %v217, 0
  %v286 = vsel %vm263, %v218, 0
  %v289 = vsel %vm263, %v219, 0
  %v292 = vsel %vm263, %v220, 0
  %v295 = vsel %vm263, %v221, 0
  %v298 = vsel %vm263, %v222, 0
  %v301 = vsel %vm263, %v223, 0
  %v304 = vsel %vm263, %v224, 0
  %v307 = vsel %vm263, %v225, 0
  %v310 = vsel %vm263, %v226, 0
  %312 = vmatprep.subr.bf16.mxu0 %v180
  %313 = vmatpush1.bf16.msra.mxu0 %v179
  %314 = vmatprep.subr.bf16.mxu0 %v196
  %315 = vmatpush1.bf16.msra.mxu0 %v195
  %316 = vmatprep.subr.bf16.mxu0 %v268
  %317 = vmatpush1.bf16.msra.mxu0 %v265
  %318 = vmatprep.subr.bf16.mxu0 0
  %319 = vmatpush1.bf16.msra.mxu0 0
  %320 = vmatprep.subr.bf16.mxu0 0
  %321 = vmatpush1.bf16.msra.mxu0 0
  %322 = vmatprep.subr.bf16.mxu0 0
  %323 = vmatpush1.bf16.msra.mxu0 0
  %324 = vmatprep.subr.bf16.mxu0 0
  %325 = vmatpush1.bf16.msra.mxu0 0
  %326 = vmatprep.subr.bf16.mxu0 0
  %327 = vmatpush1.bf16.msra.mxu0 0
  %328 = vmatprep.subr.bf16.mxu0 0
  %329 = vmatpush1.bf16.msra.mxu0 0
  %330 = vmatprep.subr.bf16.mxu0 0
  %331 = vmatpush1.bf16.msra.mxu0 0
  %332 = vmatprep.subr.bf16.mxu0 0
  %333 = vmatpush1.bf16.msra.mxu0 0
  %334 = vmatprep.subr.bf16.mxu0 0
  %335 = vmatpush1.bf16.msra.mxu0 0
  %336 = vmatprep.subr.bf16.mxu0 0
  %337 = vmatpush1.bf16.msra.mxu0 0
  %338 = vmatprep.subr.bf16.mxu0 0
  %339 = vmatpush1.bf16.msra.mxu0 0
  %340 = vmatprep.subr.bf16.mxu0 0
  %341 = vmatpush1.bf16.msra.mxu0 0
  %342 = vmatprep.subr.bf16.mxu0 0
  %343 = vmatpush1.bf16.msra.mxu0 0
  %344 = vmatprep.mubr.bf16.mxu0 0
  %345 = vmatmul.mubr.bf16.gmra.mrb[0].mxu0 %v261
  %v346 = vpop.f32.mrb[0].mxu0
  %v347 = vadd.f32 0.0, %v346
  %v348 = vpop.f32.mrb[0].mxu0
  %v349 = vadd.f32 0.0, %v348
  %v350 = vpop.f32.mrb[0].mxu0
  %v351 = vpop.f32.mrb[0].mxu0
  %352 = vdwg.mxu0
  %353 = vmatprep.subr.bf16.mxu0 %v182
  %354 = vmatpush1.bf16.msra.mxu0 %v181
  %355 = vmatprep.subr.bf16.mxu0 %v198
  %356 = vmatpush1.bf16.msra.mxu0 %v197
  %357 = vmatprep.subr.bf16.mxu0 %v274
  %358 = vmatpush1.bf16.msra.mxu0 %v271
  %359 = vmatprep.subr.bf16.mxu0 0
  %360 = vmatpush1.bf16.msra.mxu0 0
  %361 = vmatprep.subr.bf16.mxu0 0
  %362 = vmatpush1.bf16.msra.mxu0 0
  %363 = vmatprep.subr.bf16.mxu0 0
  %364 = vmatpush1.bf16.msra.mxu0 0
  %365 = vmatprep.subr.bf16.mxu0 0
  %366 = vmatpush1.bf16.msra.mxu0 0
  %367 = vmatprep.subr.bf16.mxu0 0
  %368 = vmatpush1.bf16.msra.mxu0 0
  %369 = vmatprep.subr.bf16.mxu0 0
  %370 = vmatpush1.bf16.msra.mxu0 0
  %371 = vmatprep.subr.bf16.mxu0 0
  %372 = vmatpush1.bf16.msra.mxu0 0
  %373 = vmatprep.subr.bf16.mxu0 0
  %374 = vmatpush1.bf16.msra.mxu0 0
  %375 = vmatprep.subr.bf16.mxu0 0
  %376 = vmatpush1.bf16.msra.mxu0 0
  %377 = vmatprep.subr.bf16.mxu0 0
  %378 = vmatpush1.bf16.msra.mxu0 0
  %379 = vmatprep.subr.bf16.mxu0 0
  %380 = vmatpush1.bf16.msra.mxu0 0
  %381 = vmatprep.subr.bf16.mxu0 0
  %382 = vmatpush1.bf16.msra.mxu0 0
  %383 = vmatprep.subr.bf16.mxu0 0
  %384 = vmatpush1.bf16.msra.mxu0 0
  %385 = vmatprep.mubr.bf16.mxu0 0
  %386 = vmatmul.mubr.bf16.gmra.mrb[0].mxu0 %v261
  %v387 = vpop.f32.mrb[0].mxu0
  %v388 = vadd.f32 0.0, %v387
  %v389 = vpop.f32.mrb[0].mxu0
  %v390 = vadd.f32 0.0, %v389
  %v391 = vpop.f32.mrb[0].mxu0
  %v392 = vpop.f32.mrb[0].mxu0
  %393 = vdwg.mxu0
  %394 = vmatprep.subr.bf16.mxu0 %v184
  %395 = vmatpush1.bf16.msra.mxu0 %v183
  %396 = vmatprep.subr.bf16.mxu0 %v200
  %397 = vmatpush1.bf16.msra.mxu0 %v199
  %398 = vmatprep.subr.bf16.mxu0 %v280
  %399 = vmatpush1.bf16.msra.mxu0 %v277
  %400 = vmatprep.subr.bf16.mxu0 0
  %401 = vmatpush1.bf16.msra.mxu0 0
  %402 = vmatprep.subr.bf16.mxu0 0
  %403 = vmatpush1.bf16.msra.mxu0 0
  %404 = vmatprep.subr.bf16.mxu0 0
  %405 = vmatpush1.bf16.msra.mxu0 0
  %406 = vmatprep.subr.bf16.mxu0 0
  %407 = vmatpush1.bf16.msra.mxu0 0
  %408 = vmatprep.subr.bf16.mxu0 0
  %409 = vmatpush1.bf16.msra.mxu0 0
  %410 = vmatprep.subr.bf16.mxu0 0
  %411 = vmatpush1.bf16.msra.mxu0 0
  %412 = vmatprep.subr.bf16.mxu0 0
  %413 = vmatpush1.bf16.msra.mxu0 0
  %414 = vmatprep.subr.bf16.mxu0 0
  %415 = vmatpush1.bf16.msra.mxu0 0
  %416 = vmatprep.subr.bf16.mxu0 0
  %417 = vmatpush1.bf16.msra.mxu0 0
  %418 = vmatprep.subr.bf16.mxu0 0
  %419 = vmatpush1.bf16.msra.mxu0 0
  %420 = vmatprep.subr.bf16.mxu0 0
  %421 = vmatpush1.bf16.msra.mxu0 0
  %422 = vmatprep.subr.bf16.mxu0 0
  %423 = vmatpush1.bf16.msra.mxu0 0
  %424 = vmatprep.subr.bf16.mxu0 0
  %425 = vmatpush1.bf16.msra.mxu0 0
  %426 = vmatprep.mubr.bf16.mxu0 0
  %427 = vmatmul.mubr.bf16.gmra.mrb[0].mxu0 %v261
  %v428 = vpop.f32.mrb[0].mxu0
  %v429 = vadd.f32 0.0, %v428
  %v430 = vpop.f32.mrb[0].mxu0
  %v431 = vadd.f32 0.0, %v430
  %v432 = vpop.f32.mrb[0].mxu0
  %v433 = vpop.f32.mrb[0].mxu0
  %434 = vdwg.mxu0
  %435 = vmatprep.subr.bf16.mxu0 %v186
  %436 = vmatpush1.bf16.msra.mxu0 %v185
  %437 = vmatprep.subr.bf16.mxu0 %v202
  %438 = vmatpush1.bf16.msra.mxu0 %v201
  %439 = vmatprep.subr.bf16.mxu0 %v286
  %440 = vmatpush1.bf16.msra.mxu0 %v283
  %441 = vmatprep.subr.bf16.mxu0 0
  %442 = vmatpush1.bf16.msra.mxu0 0
  %443 = vmatprep.subr.bf16.mxu0 0
  %444 = vmatpush1.bf16.msra.mxu0 0
  %445 = vmatprep.subr.bf16.mxu0 0
  %446 = vmatpush1.bf16.msra.mxu0 0
  %447 = vmatprep.subr.bf16.mxu0 0
  %448 = vmatpush1.bf16.msra.mxu0 0
  %449 = vmatprep.subr.bf16.mxu0 0
  %450 = vmatpush1.bf16.msra.mxu0 0
  %451 = vmatprep.subr.bf16.mxu0 0
  %452 = vmatpush1.bf16.msra.mxu0 0
  %453 = vmatprep.subr.bf16.mxu0 0
  %454 = vmatpush1.bf16.msra.mxu0 0
  %455 = vmatprep.subr.bf16.mxu0 0
  %456 = vmatpush1.bf16.msra.mxu0 0
  %457 = vmatprep.subr.bf16.mxu0 0
  %458 = vmatpush1.bf16.msra.mxu0 0
  %459 = vmatprep.subr.bf16.mxu0 0
  %460 = vmatpush1.bf16.msra.mxu0 0
  %461 = vmatprep.subr.bf16.mxu0 0
  %462 = vmatpush1.bf16.msra.mxu0 0
  %463 = vmatprep.subr.bf16.mxu0 0
  %464 = vmatpush1.bf16.msra.mxu0 0
  %465 = vmatprep.subr.bf16.mxu0 0
  %466 = vmatpush1.bf16.msra.mxu0 0
  %467 = vmatprep.mubr.bf16.mxu0 0
  %468 = vmatmul.mubr.bf16.gmra.mrb[0].mxu0 %v261
  %v469 = vpop.f32.mrb[0].mxu0
  %v470 = vadd.f32 0.0, %v469
  %v471 = vpop.f32.mrb[0].mxu0
  %v472 = vadd.f32 0.0, %v471
  %v473 = vpop.f32.mrb[0].mxu0
  %v474 = vpop.f32.mrb[0].mxu0
  %475 = vdwg.mxu0
  %476 = vmatprep.subr.bf16.mxu0 %v188
  %477 = vmatpush1.bf16.msra.mxu0 %v187
  %478 = vmatprep.subr.bf16.mxu0 %v204
  %479 = vmatpush1.bf16.msra.mxu0 %v203
  %480 = vmatprep.subr.bf16.mxu0 %v292
  %481 = vmatpush1.bf16.msra.mxu0 %v289
  %482 = vmatprep.subr.bf16.mxu0 0
  %483 = vmatpush1.bf16.msra.mxu0 0
  %484 = vmatprep.subr.bf16.mxu0 0
  %485 = vmatpush1.bf16.msra.mxu0 0
  %486 = vmatprep.subr.bf16.mxu0 0
  %487 = vmatpush1.bf16.msra.mxu0 0
  %488 = vmatprep.subr.bf16.mxu0 0
  %489 = vmatpush1.bf16.msra.mxu0 0
  %490 = vmatprep.subr.bf16.mxu0 0
  %491 = vmatpush1.bf16.msra.mxu0 0
  %492 = vmatprep.subr.bf16.mxu0 0
  %493 = vmatpush1.bf16.msra.mxu0 0
  %494 = vmatprep.subr.bf16.mxu0 0
  %495 = vmatpush1.bf16.msra.mxu0 0
  %496 = vmatprep.subr.bf16.mxu0 0
  %497 = vmatpush1.bf16.msra.mxu0 0
  %498 = vmatprep.subr.bf16.mxu0 0
  %499 = vmatpush1.bf16.msra.mxu0 0
  %500 = vmatprep.subr.bf16.mxu0 0
  %501 = vmatpush1.bf16.msra.mxu0 0
  %502 = vmatprep.subr.bf16.mxu0 0
  %503 = vmatpush1.bf16.msra.mxu0 0
  %504 = vmatprep.subr.bf16.mxu0 0
  %505 = vmatpush1.bf16.msra.mxu0 0
  %506 = vmatprep.subr.bf16.mxu0 0
  %507 = vmatpush1.bf16.msra.mxu0 0
  %508 = vmatprep.mubr.bf16.mxu0 0
  %509 = vmatmul.mubr.bf16.gmra.mrb[0].mxu0 %v261
  %v510 = vpop.f32.mrb[0].mxu0
  %v511 = vadd.f32 0.0, %v510
  %v512 = vpop.f32.mrb[0].mxu0
  %v513 = vadd.f32 0.0, %v512
  %v514 = vpop.f32.mrb[0].mxu0
  %v515 = vpop.f32.mrb[0].mxu0
  %516 = vdwg.mxu0
  %517 = vmatprep.subr.bf16.mxu0 %v190
  %518 = vmatpush1.bf16.msra.mxu0 %v189
  %519 = vmatprep.subr.bf16.mxu0 %v206
  %520 = vmatpush1.bf16.msra.mxu0 %v205
  %521 = vmatprep.subr.bf16.mxu0 %v298
  %522 = vmatpush1.bf16.msra.mxu0 %v295
  %523 = vmatprep.subr.bf16.mxu0 0
  %524 = vmatpush1.bf16.msra.mxu0 0
  %525 = vmatprep.subr.bf16.mxu0 0
  %526 = vmatpush1.bf16.msra.mxu0 0
  %527 = vmatprep.subr.bf16.mxu0 0
  %528 = vmatpush1.bf16.msra.mxu0 0
  %529 = vmatprep.subr.bf16.mxu0 0
  %530 = vmatpush1.bf16.msra.mxu0 0
  %531 = vmatprep.subr.bf16.mxu0 0
  %532 = vmatpush1.bf16.msra.mxu0 0
  %533 = vmatprep.subr.bf16.mxu0 0
  %534 = vmatpush1.bf16.msra.mxu0 0
  %535 = vmatprep.subr.bf16.mxu0 0
  %536 = vmatpush1.bf16.msra.mxu0 0
  %537 = vmatprep.subr.bf16.mxu0 0
  %538 = vmatpush1.bf16.msra.mxu0 0
  %539 = vmatprep.subr.bf16.mxu0 0
  %540 = vmatpush1.bf16.msra.mxu0 0
  %541 = vmatprep.subr.bf16.mxu0 0
  %542 = vmatpush1.bf16.msra.mxu0 0
  %543 = vmatprep.subr.bf16.mxu0 0
  %544 = vmatpush1.bf16.msra.mxu0 0
  %545 = vmatprep.subr.bf16.mxu0 0
  %546 = vmatpush1.bf16.msra.mxu0 0
  %547 = vmatprep.subr.bf16.mxu0 0
  %548 = vmatpush1.bf16.msra.mxu0 0
  %549 = vmatprep.mubr.bf16.mxu0 0
  %550 = vmatmul.mubr.bf16.gmra.mrb[0].mxu0 %v261
  %v551 = vpop.f32.mrb[0].mxu0
  %v552 = vadd.f32 0.0, %v551
  %v553 = vpop.f32.mrb[0].mxu0
  %v554 = vadd.f32 0.0, %v553
  %v555 = vpop.f32.mrb[0].mxu0
  %v556 = vpop.f32.mrb[0].mxu0
  %557 = vdwg.mxu0
  %558 = vmatprep.subr.bf16.mxu0 %v192
  %559 = vmatpush1.bf16.msra.mxu0 %v191
  %560 = vmatprep.subr.bf16.mxu0 %v208
  %561 = vmatpush1.bf16.msra.mxu0 %v207
  %562 = vmatprep.subr.bf16.mxu0 %v304
  %563 = vmatpush1.bf16.msra.mxu0 %v301
  %564 = vmatprep.subr.bf16.mxu0 0
  %565 = vmatpush1.bf16.msra.mxu0 0
  %566 = vmatprep.subr.bf16.mxu0 0
  %567 = vmatpush1.bf16.msra.mxu0 0
  %568 = vmatprep.subr.bf16.mxu0 0
  %569 = vmatpush1.bf16.msra.mxu0 0
  %570 = vmatprep.subr.bf16.mxu0 0
  %571 = vmatpush1.bf16.msra.mxu0 0
  %572 = vmatprep.subr.bf16.mxu0 0
  %573 = vmatpush1.bf16.msra.mxu0 0
  %574 = vmatprep.subr.bf16.mxu0 0
  %575 = vmatpush1.bf16.msra.mxu0 0
  %576 = vmatprep.subr.bf16.mxu0 0
  %577 = vmatpush1.bf16.msra.mxu0 0
  %578 = vmatprep.subr.bf16.mxu0 0
  %579 = vmatpush1.bf16.msra.mxu0 0
  %580 = vmatprep.subr.bf16.mxu0 0
  %581 = vmatpush1.bf16.msra.mxu0 0
  %582 = vmatprep.subr.bf16.mxu0 0
  %583 = vmatpush1.bf16.msra.mxu0 0
  %584 = vmatprep.subr.bf16.mxu0 0
  %585 = vmatpush1.bf16.msra.mxu0 0
  %586 = vmatprep.subr.bf16.mxu0 0
  %587 = vmatpush1.bf16.msra.mxu0 0
  %588 = vmatprep.subr.bf16.mxu0 0
  %589 = vmatpush1.bf16.msra.mxu0 0
  %590 = vmatprep.mubr.bf16.mxu0 0
  %591 = vmatmul.mubr.bf16.gmra.mrb[0].mxu0 %v261
  %v592 = vpop.f32.mrb[0].mxu0
  %v593 = vadd.f32 0.0, %v592
  %v594 = vpop.f32.mrb[0].mxu0
  %v595 = vadd.f32 0.0, %v594
  %v596 = vpop.f32.mrb[0].mxu0
  %v597 = vpop.f32.mrb[0].mxu0
  %598 = vdwg.mxu0
  %599 = vmatprep.subr.bf16.mxu0 %v194
  %600 = vmatpush1.bf16.msra.mxu0 %v193
  %601 = vmatprep.subr.bf16.mxu0 %v210
  %602 = vmatpush1.bf16.msra.mxu0 %v209
  %603 = vmatprep.subr.bf16.mxu0 %v310
  %604 = vmatpush1.bf16.msra.mxu0 %v307
  %605 = vmatprep.subr.bf16.mxu0 0
  %606 = vmatpush1.bf16.msra.mxu0 0
  %607 = vmatprep.subr.bf16.mxu0 0
  %608 = vmatpush1.bf16.msra.mxu0 0
  %609 = vmatprep.subr.bf16.mxu0 0
  %610 = vmatpush1.bf16.msra.mxu0 0
  %611 = vmatprep.subr.bf16.mxu0 0
  %612 = vmatpush1.bf16.msra.mxu0 0
  %613 = vmatprep.subr.bf16.mxu0 0
  %614 = vmatpush1.bf16.msra.mxu0 0
  %615 = vmatprep.subr.bf16.mxu0 0
  %616 = vmatpush1.bf16.msra.mxu0 0
  %617 = vmatprep.subr.bf16.mxu0 0
  %618 = vmatpush1.bf16.msra.mxu0 0
  %619 = vmatprep.subr.bf16.mxu0 0
  %620 = vmatpush1.bf16.msra.mxu0 0
  %621 = vmatprep.subr.bf16.mxu0 0
  %622 = vmatpush1.bf16.msra.mxu0 0
  %623 = vmatprep.subr.bf16.mxu0 0
  %624 = vmatpush1.bf16.msra.mxu0 0
  %625 = vmatprep.subr.bf16.mxu0 0
  %626 = vmatpush1.bf16.msra.mxu0 0
  %627 = vmatprep.subr.bf16.mxu0 0
  %628 = vmatpush1.bf16.msra.mxu0 0
  %629 = vmatprep.subr.bf16.mxu0 0
  %630 = vmatpush1.bf16.msra.mxu0 0
  %631 = vmatprep.mubr.bf16.mxu0 0
  %632 = vmatmul.mubr.bf16.gmra.mrb[0].mxu0 %v261
  %v633 = vpop.f32.mrb[0].mxu0
  %v634 = vadd.f32 0.0, %v633
  %v635 = vpop.f32.mrb[0].mxu0
  %v636 = vadd.f32 0.0, %v635
  %v637 = vpop.f32.mrb[0].mxu0
  %v638 = vpop.f32.mrb[0].mxu0
  %639 = vdwg.mxu0
  %v640 = vadd.f32 %v347, %v349
  %v641 = vadd.f32 %v640, %v388
  %v642 = vadd.f32 %v641, %v390
  %v643 = vadd.f32 %v642, %v429
  %v644 = vadd.f32 %v643, %v431
  %v645 = vadd.f32 %v644, %v470
  %v646 = vadd.f32 %v645, %v472
  %v647 = vadd.f32 %v646, %v511
  %v648 = vadd.f32 %v647, %v513
  %v649 = vadd.f32 %v648, %v552
  %v650 = vadd.f32 %v649, %v554
  %v651 = vadd.f32 %v650, %v593
  %v652 = vadd.f32 %v651, %v595
  %v653 = vadd.f32 %v652, %v634
  %v654 = vadd.f32 %v653, %v636
  %655 = vadd.xlane.f32.xlu0 %v654
  %v656 = vpop.xlane.xlu0 %655
  %v657 = vmul.f32 %v347, %v347
  %v658 = vmul.f32 %v349, %v349
  %v659 = vmul.f32 %v388, %v388
  %v660 = vmul.f32 %v390, %v390
  %v661 = vmul.f32 %v429, %v429
  %v662 = vmul.f32 %v431, %v431
  %v663 = vmul.f32 %v470, %v470
  %v664 = vmul.f32 %v472, %v472
  %v665 = vmul.f32 %v511, %v511
  %v666 = vmul.f32 %v513, %v513
  %v667 = vmul.f32 %v552, %v552
  %v668 = vmul.f32 %v554, %v554
  %v669 = vmul.f32 %v593, %v593
  %v670 = vmul.f32 %v595, %v595
  %v671 = vmul.f32 %v634, %v634
  %v672 = vmul.f32 %v636, %v636
  %v673 = vadd.f32 %v657, %v658
  %v674 = vadd.f32 %v673, %v659
  %v675 = vadd.f32 %v674, %v660
  %v676 = vadd.f32 %v675, %v661
  %v677 = vadd.f32 %v676, %v662
  %v678 = vadd.f32 %v677, %v663
  %v679 = vadd.f32 %v678, %v664
  %v680 = vadd.f32 %v679, %v665
  %v681 = vadd.f32 %v680, %v666
  %v682 = vadd.f32 %v681, %v667
  %v683 = vadd.f32 %v682, %v668
  %v684 = vadd.f32 %v683, %v669
  %v685 = vadd.f32 %v684, %v670
  %v686 = vadd.f32 %v685, %v671
  %v687 = vadd.f32 %v686, %v672
  %688 = vadd.xlane.f32.xlu0 %v687
  %v689 = vpop.xlane.xlu0 %688
  %v690 = vmul.f32 %v656, 0.00048828125
  %v691 = vmul.f32 %v689, 0.00048828125
  %v692 = vmul.f32 %v690, %v690
  %v693 = vsub.f32 %v691, %v692
  %v694 = vld [vmem:[%s2] sm:$0xff]
  %v695 = vadd.f32 %v693, 1e-05
  %v696 = vrsqrt.pop %v695
  %v697 = vmul.f32 %v694, %v696
  %v698 = vld [vmem:[%s3] sm:$0xff]
  %v699 = vmul.f32 %v690, %v697
  %v700 = vsub.f32 %v698, %v699
  %702 = vset.pattern.permute.xlu0 0
  %703 = vperm.xlu0 %702, %v697
  %v704 = vpop.permute.xlu0 %703
  %v706 = vmul.f32 %v347, %v704
  %v707 = vmul.f32 %v349, %v704
  %v708 = vmul.f32 %v388, %v704
  %v709 = vmul.f32 %v390, %v704
  %v710 = vmul.f32 %v429, %v704
  %v711 = vmul.f32 %v431, %v704
  %v712 = vmul.f32 %v470, %v704
  %v713 = vmul.f32 %v472, %v704
  %v714 = vmul.f32 %v511, %v704
  %v715 = vmul.f32 %v513, %v704
  %v716 = vmul.f32 %v552, %v704
  %v717 = vmul.f32 %v554, %v704
  %v718 = vmul.f32 %v593, %v704
  %v719 = vmul.f32 %v595, %v704
  %v720 = vmul.f32 %v634, %v704
  %v721 = vmul.f32 %v636, %v704
  %723 = vset.pattern.permute.xlu0 0
  %724 = vperm.xlu0 %723, %v700
  %v725 = vpop.permute.xlu0 %724
  %v727 = vadd.f32 %v706, %v725
  %v728 = vadd.f32 %v707, %v725
  %v729 = vadd.f32 %v708, %v725
  %v730 = vadd.f32 %v709, %v725
  %v731 = vadd.f32 %v710, %v725
  %v732 = vadd.f32 %v711, %v725
  %v733 = vadd.f32 %v712, %v725
  %v734 = vadd.f32 %v713, %v725
  %v735 = vadd.f32 %v714, %v725
  %v736 = vadd.f32 %v715, %v725
  %v737 = vadd.f32 %v716, %v725
  %v738 = vadd.f32 %v717, %v725
  %v739 = vadd.f32 %v718, %v725
  %v740 = vadd.f32 %v719, %v725
  %v741 = vadd.f32 %v720, %v725
  %v742 = vadd.f32 %v721, %v725
  %vm743 = vcmp.ge.f32.partialorder %v727, 0.0
  %vm744 = vcmp.ge.f32.partialorder %v728, 0.0
  %vm745 = vcmp.ge.f32.partialorder %v729, 0.0
  %vm746 = vcmp.ge.f32.partialorder %v730, 0.0
  %vm747 = vcmp.ge.f32.partialorder %v731, 0.0
  %vm748 = vcmp.ge.f32.partialorder %v732, 0.0
  %vm749 = vcmp.ge.f32.partialorder %v733, 0.0
  %vm750 = vcmp.ge.f32.partialorder %v734, 0.0
  %vm751 = vcmp.ge.f32.partialorder %v735, 0.0
  %vm752 = vcmp.ge.f32.partialorder %v736, 0.0
  %vm753 = vcmp.ge.f32.partialorder %v737, 0.0
  %vm754 = vcmp.ge.f32.partialorder %v738, 0.0
  %vm755 = vcmp.ge.f32.partialorder %v739, 0.0
  %vm756 = vcmp.ge.f32.partialorder %v740, 0.0
  %vm757 = vcmp.ge.f32.partialorder %v741, 0.0
  %vm758 = vcmp.ge.f32.partialorder %v742, 0.0
  %v759 = vmul.f32 %v727, 0.2
  %v760 = vmul.f32 %v728, 0.2
  %v761 = vmul.f32 %v729, 0.2
  %v762 = vmul.f32 %v730, 0.2
  %v763 = vmul.f32 %v731, 0.2
  %v764 = vmul.f32 %v732, 0.2
  %v765 = vmul.f32 %v733, 0.2
  %v766 = vmul.f32 %v734, 0.2
  %v767 = vmul.f32 %v735, 0.2
  %v768 = vmul.f32 %v736, 0.2
  %v769 = vmul.f32 %v737, 0.2
  %v770 = vmul.f32 %v738, 0.2
  %v771 = vmul.f32 %v739, 0.2
  %v772 = vmul.f32 %v740, 0.2
  %v773 = vmul.f32 %v741, 0.2
  %v774 = vmul.f32 %v742, 0.2
  %v775 = vsel %vm743, %v727, %v759
  %v776 = vsel %vm744, %v728, %v760
  %v777 = vsel %vm745, %v729, %v761
  %v778 = vsel %vm746, %v730, %v762
  %v779 = vsel %vm747, %v731, %v763
  %v780 = vsel %vm748, %v732, %v764
  %v781 = vsel %vm749, %v733, %v765
  %v782 = vsel %vm750, %v734, %v766
  %v783 = vsel %vm751, %v735, %v767
  %v784 = vsel %vm752, %v736, %v768
  %v785 = vsel %vm753, %v737, %v769
  %v786 = vsel %vm754, %v738, %v770
  %v787 = vsel %vm755, %v739, %v771
  %v788 = vsel %vm756, %v740, %v772
  %v789 = vsel %vm757, %v741, %v773
  %v790 = vsel %vm758, %v742, %v774
  %791 = vst [vmem:[%s4] sm:$0xff] %v775
  %792 = vst [vmem:[%s4 + $0x8] sm:$0xff] %v776
  %793 = vst [vmem:[%s4 + $0x10] sm:$0xff] %v777
  %794 = vst [vmem:[%s4 + $0x18] sm:$0xff] %v778
  %795 = vst [vmem:[%s4 + $0x20] sm:$0xff] %v779
  %796 = vst [vmem:[%s4 + $0x28] sm:$0xff] %v780
  %797 = vst [vmem:[%s4 + $0x30] sm:$0xff] %v781
  %798 = vst [vmem:[%s4 + $0x38] sm:$0xff] %v782
  %s799 = scalar_lea.vmem %s4, 64
  %800 = vst [vmem:[%s799] sm:$0xff] %v783
  %801 = vst [vmem:[%s799 + $0x8] sm:$0xff] %v784
  %802 = vst [vmem:[%s799 + $0x10] sm:$0xff] %v785
  %803 = vst [vmem:[%s799 + $0x18] sm:$0xff] %v786
  %804 = vst [vmem:[%s799 + $0x20] sm:$0xff] %v787
  %805 = vst [vmem:[%s799 + $0x28] sm:$0xff] %v788
  %806 = vst [vmem:[%s799 + $0x30] sm:$0xff] %v789
  %807 = vst [vmem:[%s799 + $0x38] sm:$0xff] %v790
  // Predicated region
  $region18: #{upconv_block.1} parent=0 // pred_check
    _
  $region19: #{upconv_block.1} parent=0 // pred_check_branch
    %809 = sbr.rel (0) target = $region21
  $region20: #{upconv_block.1} parent=0 // pred_region
    _
  $region21: #{upconv_block.1} parent=0 // pred_fallthru
    _
  // Predicated region
  $region22: #{upconv_block.1} parent=0 // pred_check
    _
  $region23: #{upconv_block.1} parent=0 // pred_check_branch
    %811 = sbr.rel (0) target = $region25
  $region24: #{upconv_block.1} parent=0 // pred_region
    _
  $region25: #{upconv_block.1} parent=0 // pred_fallthru
    _

</llo_original>
